<compile_context>
chip_gen: v6e
topology: v6e:2x2x1
jax: 0.10.0
libtpu: 0.0.40
codegen_flags: <defaults>
</compile_context>

<pallas_src>
import functools

import jax
import jax.numpy as jnp
from jax.experimental import pallas as pl
from jax.experimental.pallas import tpu as pltpu


def _round_up(x, m):
    return (x + m - 1) // m * m


# ---------------------------------------------------------------------------
# Kernel 1: hoisted, time-parallel input projection
#   gi = x @ W_ih^T + (b_ih + [b_hh_r, b_hh_z, 0])
# ---------------------------------------------------------------------------
def _proj_kernel(x_ref, w_ref, b_ref, gi_ref):
    gi_ref[...] = (
        jnp.dot(x_ref[...], w_ref[...], preferred_element_type=jnp.float32)
        + b_ref[...])


def _input_projection(x2d, w_t, bias, *, tm):
    """x2d (M, Ein) bf16, w_t (Ein, 3Hp) bf16, bias (1, 3Hp) f32 -> (M, 3Hp) f32."""
    m, e_in = x2d.shape
    three_h = w_t.shape[1]
    return pl.pallas_call(
        _proj_kernel,
        out_shape=jax.ShapeDtypeStruct((m, three_h), jnp.float32),
        grid_spec=pltpu.PrefetchScalarGridSpec(
            num_scalar_prefetch=0,
            grid=(m // tm,),
            in_specs=[
                pl.BlockSpec((tm, e_in), lambda i: (i, 0)),        # x rows
                pl.BlockSpec((e_in, three_h), lambda i: (0, 0)),   # W_ih^T
                pl.BlockSpec((1, three_h), lambda i: (0, 0)),      # folded bias
            ],
            out_specs=pl.BlockSpec((tm, three_h), lambda i: (i, 0)),
        ),
        compiler_params=pltpu.CompilerParams(
            dimension_semantics=("parallel",)),
    )(x2d, w_t, bias)


# ---------------------------------------------------------------------------
# Kernel 2: the serial GRU recurrence.  Only gh = h @ W_hh^T stays in the loop.
# Gate layout on the 3H axis is gate-blocked: [r (H_pad) | z (H_pad) | n (H_pad)].
# ---------------------------------------------------------------------------
def _gru_kernel(gi_ref, whh_ref, bhhn_ref, out_ref, h_scratch, *, tt, hp):
    t_blk = pl.program_id(1)

    @pl.when(t_blk == 0)
    def _():
        h_scratch[...] = jnp.zeros_like(h_scratch)

    whh = whh_ref[...]          # (H_pad, 3*H_pad) bf16, VMEM-resident
    bhh_n = bhhn_ref[...]       # (1, H_pad) f32 (n-gate hidden bias only)

    def step(i, h):
        gi = gi_ref[i]          # (TB, 3*H_pad) f32, precomputed projection
        gh = jnp.dot(h.astype(whh.dtype), whh,
                     preferred_element_type=jnp.float32)           # (TB, 3*H_pad)
        r = jax.nn.sigmoid(gi[:, 0 * hp:1 * hp] + gh[:, 0 * hp:1 * hp])
        z = jax.nn.sigmoid(gi[:, 1 * hp:2 * hp] + gh[:, 1 * hp:2 * hp])
        n = jnp.tanh(gi[:, 2 * hp:3 * hp] + r * (gh[:, 2 * hp:3 * hp] + bhh_n))
        h_new = (1.0 - z) * n + z * h
        out_ref[i] = h_new.astype(out_ref.dtype)
        return h_new

    h0 = h_scratch[...]
    h_last = jax.lax.fori_loop(0, tt, step, h0, unroll=True)
    h_scratch[...] = h_last


def _gru_recurrence(gi, whh_t, bhh_n, *, tt, tb, h_pad):
    """gi (T_pad, B_pad, 3*H_pad) f32 -> output (T_pad, B_pad, H_pad) bf16."""
    t_pad, b_pad, three_h = gi.shape
    grid = (b_pad // tb, t_pad // tt)
    return pl.pallas_call(
        functools.partial(_gru_kernel, tt=tt, hp=h_pad),
        out_shape=jax.ShapeDtypeStruct((t_pad, b_pad, h_pad), jnp.bfloat16),
        grid_spec=pltpu.PrefetchScalarGridSpec(
            num_scalar_prefetch=0,
            grid=grid,
            in_specs=[
                pl.BlockSpec((tt, tb, three_h), lambda b, t: (t, b, 0)),  # gi
                pl.BlockSpec((h_pad, three_h), lambda b, t: (0, 0)),      # W_hh^T
                pl.BlockSpec((1, h_pad), lambda b, t: (0, 0)),            # b_hh_n
            ],
            out_specs=pl.BlockSpec((tt, tb, h_pad), lambda b, t: (t, b, 0)),
            scratch_shapes=[pltpu.VMEM((tb, h_pad), jnp.float32)],        # h carry
        ),
        compiler_params=pltpu.CompilerParams(
            # batch blocks are independent (megacore-parallel on v7x); the
            # time axis is the serial recurrence -> must stay "arbitrary".
            dimension_semantics=("parallel", "arbitrary"),
        ),
    )(gi, whh_t, bhh_n)


# ---------------------------------------------------------------------------
# Padding helpers: gate-blocked [r | z | n] layout, each gate padded to H_pad.
# ---------------------------------------------------------------------------
def _pad_gate_cols(w_t, in_pad, h_pad):
    """w_t (in_dim, 3H) -> (in_pad, 3*h_pad), gate-blocked cols, zero padding."""
    in_dim, three_h = w_t.shape
    h = three_h // 3
    out = jnp.zeros((in_pad, 3 * h_pad), w_t.dtype)
    for g in range(3):
        out = out.at[:in_dim, g * h_pad:g * h_pad + h].set(
            w_t[:, g * h:(g + 1) * h])
    return out


def _pad_gate_bias(b, h_pad):
    """b (3H,) -> (1, 3*h_pad), gate-blocked, zero padding."""
    h = b.shape[0] // 3
    out = jnp.zeros((1, 3 * h_pad), b.dtype)
    for g in range(3):
        out = out.at[0, g * h_pad:g * h_pad + h].set(b[g * h:(g + 1) * h])
    return out


class Seq2SeqEncoderPallas:
    """JAX/Pallas equivalent of the PyTorch Seq2SeqEncoder forward pass."""

    def __init__(self, vocab_size, embed_size, num_hiddens, num_layers,
                 dropout=0.0, key=None):
        assert dropout == 0.0  # TODO(synk): inter-layer dropout not implemented (module default is 0)
        if key is None:
            key = jax.random.PRNGKey(0)
        self.vocab_size = vocab_size
        self.embed_size = embed_size
        self.num_hiddens = num_hiddens
        self.num_layers = num_layers

        k_emb, key = jax.random.split(key)
        # nn.Embedding default init: N(0, 1)
        self.embedding = jax.random.normal(
            k_emb, (vocab_size, embed_size), dtype=jnp.float32)

        # nn.GRU default init: U(-1/sqrt(H), 1/sqrt(H)) for all params.
        bound = 1.0 / jnp.sqrt(jnp.float32(num_hiddens))
        self.layers = []
        for layer in range(num_layers):
            in_size = embed_size if layer == 0 else num_hiddens
            key, k1, k2, k3, k4 = jax.random.split(key, 5)
            w_ih = jax.random.uniform(k1, (3 * num_hiddens, in_size),
                                      minval=-bound, maxval=bound,
                                      dtype=jnp.float32)
            w_hh = jax.random.uniform(k2, (3 * num_hiddens, num_hiddens),
                                      minval=-bound, maxval=bound,
                                      dtype=jnp.float32)
            b_ih = jax.random.uniform(k3, (3 * num_hiddens,),
                                      minval=-bound, maxval=bound,
                                      dtype=jnp.float32)
            b_hh = jax.random.uniform(k4, (3 * num_hiddens,),
                                      minval=-bound, maxval=bound,
                                      dtype=jnp.float32)
            self.layers.append((w_ih, w_hh, b_ih, b_hh))

        # --- kernel-side parameters: padded, gate-blocked, bf16 weights -----
        self.h_pad = _round_up(num_hiddens, 128)
        self.e_pad = _round_up(embed_size, 128)
        H = num_hiddens
        self._prepped = []
        for layer, (w_ih, w_hh, b_ih, b_hh) in enumerate(self.layers):
            in_pad = self.e_pad if layer == 0 else self.h_pad
            # Fold b_ih plus the r/z thirds of b_hh into the hoisted projection
            # bias; the n-gate b_hh must stay inside the r*(...) term.
            b_proj = b_ih + jnp.concatenate(
                [b_hh[:H], b_hh[H:2 * H], jnp.zeros((H,), jnp.float32)])
            wih_p = _pad_gate_cols(w_ih.T, in_pad, self.h_pad).astype(jnp.bfloat16)
            whh_p = _pad_gate_cols(w_hh.T, self.h_pad, self.h_pad).astype(jnp.bfloat16)
            bproj_p = _pad_gate_bias(b_proj, self.h_pad)            # f32
            bhhn_p = jnp.zeros((1, self.h_pad), jnp.float32).at[0, :H].set(
                b_hh[2 * H:])
            self._prepped.append((wih_p, whh_p, bproj_p, bhhn_p))

    def __call__(self, X):
        """X: int32 token ids (B, T). Returns (output (T,B,H), state (L,B,H))."""
        B, T = X.shape
        H, Hp, Ep = self.num_hiddens, self.h_pad, self.e_pad

        # Time blocking / batch+lane padding.  Padded time steps come after the
        # real ones (never corrupt real outputs); padded batch rows / hidden
        # columns are zero-weighted and sliced off at the end.
        tt = min(16, _round_up(T, 8))          # timesteps per grid iteration
        t_pad = _round_up(T, tt)
        tb = min(256, _round_up(B, 16))        # batch rows per grid block
        b_pad = _round_up(B, tb)
        tm = tt * b_pad                        # projection row-block (divides T_pad*B_pad)

        # Embedding gather + permute to time-major (plain-JAX glue).
        emb = jnp.take(self.embedding, X, axis=0)        # (B, T, E)
        x = jnp.transpose(emb, (1, 0, 2))                # (T, B, E) = X.permute(1,0,2)
        x = jnp.pad(x, ((0, t_pad - T), (0, b_pad - B), (0, Ep - self.embed_size)))
        x = x.astype(jnp.bfloat16)                       # streamed activations in bf16

        states = []
        for layer, (wih_p, whh_p, bproj_p, bhhn_p) in enumerate(self._prepped):
            in_pad = Ep if layer == 0 else Hp
            # (1) hoisted time-parallel projection: one big MXU matmul.
            x2d = x.reshape(t_pad * b_pad, in_pad)
            gi2d = _input_projection(x2d, wih_p, bproj_p, tm=tm)
            gi = gi2d.reshape(t_pad, b_pad, 3 * Hp)
            # (2) serial recurrence (only h @ W_hh^T left in the loop).
            x = _gru_recurrence(gi, whh_p, bhhn_p, tt=tt, tb=tb, h_pad=Hp)
            # Final state of this layer is just its output at the last real step.
            states.append(x[T - 1, :B, :H].astype(jnp.float32))

        output = x[:T, :B, :H].astype(jnp.float32)       # (T, B, H)
        state = jnp.stack(states, axis=0)                # (num_layers, B, H)
        return output, state


def _reference_gru(x_tbe, layers):
    """Pure-JAX f32 reference (torch.nn.GRU semantics) for correctness check."""
    h = x_tbe
    states = []
    for (w_ih, w_hh, b_ih, b_hh) in layers:
        H = w_hh.shape[1]
        B = h.shape[1]

        def step(h_prev, x_t, w_ih=w_ih, w_hh=w_hh, b_ih=b_ih, b_hh=b_hh, H=H):
            gi = x_t @ w_ih.T + b_ih
            gh = h_prev @ w_hh.T + b_hh
            r = jax.nn.sigmoid(gi[:, :H] + gh[:, :H])
            z = jax.nn.sigmoid(gi[:, H:2 * H] + gh[:, H:2 * H])
            n = jnp.tanh(gi[:, 2 * H:] + r * gh[:, 2 * H:])
            h_new = (1 - z) * n + z * h_prev
            return h_new, h_new

        h0 = jnp.zeros((B, H), jnp.float32)
        last, out = jax.lax.scan(step, h0, h)
        h = out
        states.append(last)
    return h, jnp.stack(states, axis=0)


if __name__ == "__main__":
    vocab_size, embed_size, num_hiddens, num_layers = 32, 8, 16, 2
    batch, seq_len = 2, 8

    key = jax.random.PRNGKey(0)
    k_tok, k_params = jax.random.split(key)
    X = jax.random.randint(k_tok, (batch, seq_len), 0, vocab_size,
                           dtype=jnp.int32)

    encoder = Seq2SeqEncoderPallas(vocab_size, embed_size, num_hiddens,
                                   num_layers, dropout=0.0, key=k_params)

    output, state = encoder(X)
    output = jax.block_until_ready(output)
    state = jax.block_until_ready(state)

    assert output.shape == (seq_len, batch, num_hiddens)
    assert state.shape == (num_layers, batch, num_hiddens)

    # Cross-check against the pure-JAX f32 reference.  The kernel uses bf16
    # weights/activations with f32 accumulation, so allow bf16-level tolerance.
    emb = jnp.take(encoder.embedding, X, axis=0)
    x_tbe = jnp.transpose(emb, (1, 0, 2))
    ref_out, ref_state = _reference_gru(x_tbe, encoder.layers)
    max_out_err = float(jnp.max(jnp.abs(output - ref_out)))
    max_st_err = float(jnp.max(jnp.abs(state - ref_state)))
    assert jnp.allclose(output, ref_out, atol=3e-2, rtol=3e-2), max_out_err
    assert jnp.allclose(state, ref_state, atol=3e-2, rtol=3e-2), max_st_err

    print("KERNEL_OK")
</pallas_src>

<mosaic_0001>
module attributes {stable_mosaic.version = 11 : i64} {
  func.func @_proj_kernel(%arg0: i32, %arg1: memref<128x128xbf16, #tpu.memory_space<vmem>>, %arg2: memref<128x384xbf16, #tpu.memory_space<vmem>>, %arg3: memref<1x384xf32, #tpu.memory_space<vmem>>, %arg4: memref<128x384xf32, #tpu.memory_space<vmem>>) attributes {dimension_semantics = [#tpu.dimension_semantics<parallel>], iteration_bounds = array<i64: 1>, scalar_prefetch = 0 : i64, scratch_operands = 0 : i64, tpu.core_type = #tpu.core_type<tc>, window_params = [{transform_indices = @transform_0, window_bounds = array<i64: 128, 128>}, {pipeline_mode = #tpu.pipeline_mode<synchronous>, transform_indices = @transform_1, window_bounds = array<i64: 128, 384>}, {pipeline_mode = #tpu.pipeline_mode<synchronous>, transform_indices = @transform_2, window_bounds = array<i64: 1, 384>}, {transform_indices = @transform_3, window_bounds = array<i64: 128, 384>}]} {
    %c0 = arith.constant 0 : index
    %c0_0 = arith.constant 0 : index
    %0 = vector.load %arg1[%c0, %c0_0] : memref<128x128xbf16, #tpu.memory_space<vmem>>, vector<128x128xbf16>
    %c0_1 = arith.constant 0 : index
    %c0_2 = arith.constant 0 : index
    %1 = vector.load %arg2[%c0_1, %c0_2] : memref<128x384xbf16, #tpu.memory_space<vmem>>, vector<128x384xbf16>
    %cst = arith.constant dense<0.000000e+00> : vector<128x384xf32>
    %2 = tpu.matmul %0, %1, %cst {dimension_numbers = #tpu.dot_dimension_numbers<[1], [0], [0], [1], [0, 0, 1, 1], [], []>} : vector<128x128xbf16>, vector<128x384xbf16>, vector<128x384xf32> -> vector<128x384xf32>
    %c0_3 = arith.constant 0 : index
    %c0_4 = arith.constant 0 : index
    %3 = vector.load %arg3[%c0_3, %c0_4] : memref<1x384xf32, #tpu.memory_space<vmem>>, vector<1x384xf32>
    %4 = vector.broadcast %3 : vector<1x384xf32> to vector<128x384xf32>
    %5 = arith.addf %2, %4 : vector<128x384xf32>
    %c0_5 = arith.constant 0 : index
    %c0_6 = arith.constant 0 : index
    %6 = vector.load %arg4[%c0_5, %c0_6] : memref<128x384xf32, #tpu.memory_space<vmem>>, vector<128x384xf32>
    tpu.vector_store %arg4[%c0_5, %c0_6], %5 {strides = array<i32>} : memref<128x384xf32, #tpu.memory_space<vmem>>, vector<128x384xf32>,
    return
  }
  func.func @transform_0(%arg0: i32) -> (i32, i32) {
    %c0_i32 = arith.constant 0 : i32
    %c0_i32_0 = arith.constant 0 : i32
    return %arg0, %c0_i32 : i32, i32
  }
  func.func @transform_1(%arg0: i32) -> (i32, i32) {
    %c0_i32 = arith.constant 0 : i32
    %c0_i32_0 = arith.constant 0 : i32
    %c0_i32_1 = arith.constant 0 : i32
    return %c0_i32, %c0_i32_0 : i32, i32
  }
  func.func @transform_2(%arg0: i32) -> (i32, i32) {
    %c0_i32 = arith.constant 0 : i32
    %c0_i32_0 = arith.constant 0 : i32
    %c0_i32_1 = arith.constant 0 : i32
    return %c0_i32, %c0_i32_0 : i32, i32
  }
  func.func @transform_3(%arg0: i32) -> (i32, i32) {
    %c0_i32 = arith.constant 0 : i32
    %c0_i32_0 = arith.constant 0 : i32
    return %arg0, %c0_i32 : i32, i32
  }
}

</mosaic_0001>

<llo_original>
// kernel: tpu_custom_call.1
$region0: #{tpu_custom_call.1}
  #allocation0 [shape = 'u32[]', space=smem, size = 0x4, offset = 0x4, fixed_abs, tag = 'smem constant byte address 0x4 - core index']
  #allocation1 [shape = 'u32[144,128]{1,0:T(1,128)}', space=vmem, size = 0x12000, scoped, tag = 'internal scratch']
  %s0 = inlined_call_operand.hbm [shape: bf16[128,128], index: 0, kind: input, shape index: {}]
  %s1 = inlined_call_operand.hbm [shape: bf16[128,384], index: 1, kind: input, shape index: {}]
  %s2 = inlined_call_operand.vmem [shape: f32[1,384], index: 2, kind: input, shape index: {}]
  %s3 = inlined_call_operand.hbm [shape: f32[128,384], index: 3, kind: output, shape index: {}]
  %s4 = sld [smem:[#allocation0]]
  $region30: #{tpu_custom_call.1} parent=0
    _
  %s6 = ssub.s32 1, %s4
  %s7 = scalar_select 0, %s6, %s4
  $region1: #{tpu_custom_call.1} parent=0
    #allocation2 [shape = 'u8[32768]{0}', space=vmem, size = 0x8000, scoped, tag = 'input window, operand 0, single buffered']
    #allocation3 [shape = 's32[1]{0}', space=sflag, size = 0x4, scoped, tag = 'scoped memory for tpu_custom_call.1']
    #allocation4 [shape = 's32[1]{0}', space=sflag, size = 0x4, scoped, tag = 'scoped memory for tpu_custom_call.1']
    #allocation5 [shape = 'u8[98304]{0}', space=vmem, size = 0x18000, scoped, tag = 'input window, operand 1, single buffered']
    #allocation6 [shape = 's32[1]{0}', space=sflag, size = 0x4, scoped, tag = 'scoped memory for tpu_custom_call.1']
    #allocation7 [shape = 'u8[196608]{0}', space=vmem, size = 0x30000, scoped, tag = 'output window, operand 0, single buffered']
    %8 = vsyncpa [#allocation3], 0
    %9 = vsyncpa [#allocation6], 0
    %10 = vsyncpa [#allocation4], 0
    // Predicated region
    $region2: #{tpu_custom_call.1} parent=1 // pred_check
      _
    $region3: #{tpu_custom_call.1} parent=1 // pred_check_branch
      %12 = sbr.rel (0) target = $region5
    $region4: #{tpu_custom_call.1} parent=1 // pred_region
      %s14 = ssub.s32 1024, 1024
      %15 = vsyncadd [#allocation3], %s14
      %s16 = sshll.u32 [#allocation2], 4
      %s17 = int_to_ptr.vmem [resolvable:$true] %s16
      %22 = dma.hbm_to_vmem [thread:$0]  %s0, 1024, %s17, [#allocation3], 64, 64, 4
    $region5: #{tpu_custom_call.1} parent=1 // pred_fallthru
      _
    // Predicated region
    $region6: #{tpu_custom_call.1} parent=1 // pred_check
      _
    $region7: #{tpu_custom_call.1} parent=1 // pred_check_branch
      %24 = sbr.rel (0) target = $region9
    $region8: #{tpu_custom_call.1} parent=1 // pred_region
      %s26 = ssub.s32 3072, 3072
      %27 = vsyncadd [#allocation6], %s26
      %s28 = sshll.u32 [#allocation5], 4
      %s29 = int_to_ptr.vmem [resolvable:$true] %s28
      %34 = dma.hbm_to_vmem [thread:$0]  %s1, 3072, %s29, [#allocation6], 192, 192, 12
    $region9: #{tpu_custom_call.1} parent=1 // pred_fallthru
      _
    // Predicated region
    $region10: #{tpu_custom_call.1} parent=1 // pred_check
      _
    $region11: #{tpu_custom_call.1} parent=1 // pred_check_branch
      %36 = sbr.rel (0) target = $region13
    $region12: #{tpu_custom_call.1} parent=1 // pred_region
      _
    $region13: #{tpu_custom_call.1} parent=1 // pred_fallthru
      _
    // Predicated region
    $region14: #{tpu_custom_call.1} parent=1 // pred_check
      _
    $region15: #{tpu_custom_call.1} parent=1 // pred_check_branch
      %38 = sbr.rel (0) target = $region17
    $region16: #{tpu_custom_call.1} parent=1 // pred_region
      %39 = dma.done [#allocation3], 1024
    $region17: #{tpu_custom_call.1} parent=1 // pred_fallthru
      _
    // Predicated region
    $region18: #{tpu_custom_call.1} parent=1 // pred_check
      _
    $region19: #{tpu_custom_call.1} parent=1 // pred_check_branch
      %41 = sbr.rel (0) target = $region21
    $region20: #{tpu_custom_call.1} parent=1 // pred_region
      %42 = dma.done [#allocation6], 3072
    $region21: #{tpu_custom_call.1} parent=1 // pred_fallthru
      _
    %v44 = vld [vmem:[#allocation2] sm:$0xf]
    %v45 = vld [vmem:[#allocation2 + $0x4] sm:$0xf]
    %v46 = vld [vmem:[#allocation2 + $0x8] sm:$0xf]
    %v47 = vld [vmem:[#allocation2 + $0xc] sm:$0xf]
    %v48 = vld [vmem:[#allocation2 + $0x10] sm:$0xf]
    %v49 = vld [vmem:[#allocation2 + $0x14] sm:$0xf]
    %v50 = vld [vmem:[#allocation2 + $0x18] sm:$0xf]
    %v51 = vld [vmem:[#allocation2 + $0x1c] sm:$0xf]
    %v52 = vld [vmem:[#allocation2 + $0x20] sm:$0xf]
    %v53 = vld [vmem:[#allocation2 + $0x24] sm:$0xf]
    %v54 = vld [vmem:[#allocation2 + $0x28] sm:$0xf]
    %v55 = vld [vmem:[#allocation2 + $0x2c] sm:$0xf]
    %v56 = vld [vmem:[#allocation2 + $0x30] sm:$0xf]
    %v57 = vld [vmem:[#allocation2 + $0x34] sm:$0xf]
    %v58 = vld [vmem:[#allocation2 + $0x38] sm:$0xf]
    %v59 = vld [vmem:[#allocation2 + $0x3c] sm:$0xf]
    %v60 = vld [vmem:[#allocation5] sm:$0xff]
    %v61 = vld [vmem:[#allocation5 + $0x8] sm:$0xf]
    %v62 = vld [vmem:[#allocation5 + $0xc] sm:$0xff]
    %v63 = vld [vmem:[#allocation5 + $0x14] sm:$0xf]
    %v64 = vld [vmem:[#allocation5 + $0x18] sm:$0xff]
    %v65 = vld [vmem:[#allocation5 + $0x20] sm:$0xf]
    %v66 = vld [vmem:[#allocation5 + $0x24] sm:$0xff]
    %v67 = vld [vmem:[#allocation5 + $0x2c] sm:$0xf]
    %v68 = vld [vmem:[#allocation5 + $0x30] sm:$0xff]
    %v69 = vld [vmem:[#allocation5 + $0x38] sm:$0xf]
    %v70 = vld [vmem:[#allocation5 + $0x3c] sm:$0xff]
    %v71 = vld [vmem:[#allocation5 + $0x44] sm:$0xf]
    %v72 = vld [vmem:[#allocation5 + $0x48] sm:$0xff]
    %v73 = vld [vmem:[#allocation5 + $0x50] sm:$0xf]
    %v74 = vld [vmem:[#allocation5 + $0x54] sm:$0xff]
    %v75 = vld [vmem:[#allocation5 + $0x5c] sm:$0xf]
    %v76 = vld [vmem:[#allocation5 + $0x60] sm:$0xff]
    %v77 = vld [vmem:[#allocation5 + $0x68] sm:$0xf]
    %v78 = vld [vmem:[#allocation5 + $0x6c] sm:$0xff]
    %v79 = vld [vmem:[#allocation5 + $0x74] sm:$0xf]
    %v80 = vld [vmem:[#allocation5 + $0x78] sm:$0xff]
    %v81 = vld [vmem:[#allocation5 + $0x80] sm:$0xf]
    %v82 = vld [vmem:[#allocation5 + $0x84] sm:$0xff]
    %v83 = vld [vmem:[#allocation5 + $0x8c] sm:$0xf]
    %v84 = vld [vmem:[#allocation5 + $0x90] sm:$0xff]
    %v85 = vld [vmem:[#allocation5 + $0x98] sm:$0xf]
    %v86 = vld [vmem:[#allocation5 + $0x9c] sm:$0xff]
    %v87 = vld [vmem:[#allocation5 + $0xa4] sm:$0xf]
    %v88 = vld [vmem:[#allocation5 + $0xa8] sm:$0xff]
    %v89 = vld [vmem:[#allocation5 + $0xb0] sm:$0xf]
    %v90 = vld [vmem:[#allocation5 + $0xb4] sm:$0xff]
    %v91 = vld [vmem:[#allocation5 + $0xbc] sm:$0xf]
    %v92 = vld [vmem:[%s2] sm:$0x7]
    %v94 = vlaneseq
    %v95 = vshrl.u32 %v94, 7
    %v96 = vsub.s32 0, %v95
    %v97 = vrot.slane %v92, %v96
    %v98 = vlaneseq
    %v99 = vshrl.u32 %v98, 7
    %v100 = vsub.s32 1, %v99
    %v101 = vrot.slane %v92, %v100
    %v102 = vlaneseq
    %v103 = vshrl.u32 %v102, 7
    %v104 = vsub.s32 2, %v103
    %v105 = vrot.slane %v92, %v104
    %v125 = vunpack.c.l.b16 %v44
    %v126 = vunpack.c.l.b16 %v45
    %v127 = vunpack.c.l.b16 %v46
    %v128 = vunpack.c.l.b16 %v47
    %v129 = vunpack.c.l.b16 %v48
    %v130 = vunpack.c.l.b16 %v49
    %v131 = vunpack.c.l.b16 %v50
    %v132 = vunpack.c.l.b16 %v51
    %v133 = vunpack.c.l.b16 %v52
    %v134 = vunpack.c.l.b16 %v53
    %v135 = vunpack.c.l.b16 %v54
    %v136 = vunpack.c.l.b16 %v55
    %v137 = vunpack.c.l.b16 %v56
    %v138 = vunpack.c.l.b16 %v57
    %v139 = vunpack.c.l.b16 %v58
    %v140 = vunpack.c.l.b16 %v59
    %v141 = vpack.c.b16 %v126, %v125
    %v142 = vpack.c.b16 %v128, %v127
    %v143 = vpack.c.b16 %v130, %v129
    %v144 = vpack.c.b16 %v132, %v131
    %v145 = vpack.c.b16 %v134, %v133
    %v146 = vpack.c.b16 %v136, %v135
    %v147 = vpack.c.b16 %v138, %v137
    %v148 = vpack.c.b16 %v140, %v139
    %v189 = vunpack.c.l.b16 %v60
    %v190 = vunpack.c.h.b16 %v60
    %v191 = vunpack.c.l.b16 %v61
    %v192 = vunpack.c.l.b16 %v62
    %v193 = vunpack.c.h.b16 %v62
    %v194 = vunpack.c.l.b16 %v63
    %v195 = vunpack.c.l.b16 %v64
    %v196 = vunpack.c.h.b16 %v64
    %v197 = vunpack.c.l.b16 %v65
    %v198 = vunpack.c.l.b16 %v66
    %v199 = vunpack.c.h.b16 %v66
    %v200 = vunpack.c.l.b16 %v67
    %v201 = vunpack.c.l.b16 %v68
    %v202 = vunpack.c.h.b16 %v68
    %v203 = vunpack.c.l.b16 %v69
    %v204 = vunpack.c.l.b16 %v70
    %v205 = vunpack.c.h.b16 %v70
    %v206 = vunpack.c.l.b16 %v71
    %v207 = vunpack.c.l.b16 %v72
    %v208 = vunpack.c.h.b16 %v72
    %v209 = vunpack.c.l.b16 %v73
    %v210 = vunpack.c.l.b16 %v74
    %v211 = vunpack.c.h.b16 %v74
    %v212 = vunpack.c.l.b16 %v75
    %v213 = vunpack.c.l.b16 %v76
    %v214 = vunpack.c.h.b16 %v76
    %v215 = vunpack.c.l.b16 %v77
    %v216 = vunpack.c.l.b16 %v78
    %v217 = vunpack.c.h.b16 %v78
    %v218 = vunpack.c.l.b16 %v79
    %v219 = vunpack.c.l.b16 %v80
    %v220 = vunpack.c.h.b16 %v80
    %v221 = vunpack.c.l.b16 %v81
    %v222 = vunpack.c.l.b16 %v82
    %v223 = vunpack.c.h.b16 %v82
    %v224 = vunpack.c.l.b16 %v83
    %v225 = vunpack.c.l.b16 %v84
    %v226 = vunpack.c.h.b16 %v84
    %v227 = vunpack.c.l.b16 %v85
    %v228 = vunpack.c.l.b16 %v86
    %v229 = vunpack.c.h.b16 %v86
    %v230 = vunpack.c.l.b16 %v87
    %v231 = vunpack.c.l.b16 %v88
    %v232 = vunpack.c.h.b16 %v88
    %v233 = vunpack.c.l.b16 %v89
    %v234 = vunpack.c.l.b16 %v90
    %v235 = vunpack.c.h.b16 %v90
    %v236 = vunpack.c.l.b16 %v91
    %v237 = vpack.c.b16 %v192, %v189
    %v238 = vpack.c.b16 %v193, %v190
    %v239 = vpack.c.b16 %v194, %v191
    %v240 = vpack.c.b16 %v198, %v195
    %v241 = vpack.c.b16 %v199, %v196
    %v242 = vpack.c.b16 %v200, %v197
    %v243 = vpack.c.b16 %v204, %v201
    %v244 = vpack.c.b16 %v205, %v202
    %v245 = vpack.c.b16 %v206, %v203
    %v246 = vpack.c.b16 %v210, %v207
    %v247 = vpack.c.b16 %v211, %v208
    %v248 = vpack.c.b16 %v212, %v209
    %v249 = vpack.c.b16 %v216, %v213
    %v250 = vpack.c.b16 %v217, %v214
    %v251 = vpack.c.b16 %v218, %v215
    %v252 = vpack.c.b16 %v222, %v219
    %v253 = vpack.c.b16 %v223, %v220
    %v254 = vpack.c.b16 %v224, %v221
    %v255 = vpack.c.b16 %v228, %v225
    %v256 = vpack.c.b16 %v229, %v226
    %v257 = vpack.c.b16 %v230, %v227
    %v258 = vpack.c.b16 %v234, %v231
    %v259 = vpack.c.b16 %v235, %v232
    %v260 = vpack.c.b16 %v236, %v233
    %285 = vmatprep.subr.bf16.mxu0 %v259
    %286 = vmatpush1.bf16.msra.mxu0 %v258
    %287 = vmatprep.subr.bf16.mxu0 %v256
    %288 = vmatpush1.bf16.msra.mxu0 %v255
    %289 = vmatprep.subr.bf16.mxu0 %v253
    %290 = vmatpush1.bf16.msra.mxu0 %v252
    %291 = vmatprep.subr.bf16.mxu0 %v250
    %292 = vmatpush1.bf16.msra.mxu0 %v249
    %293 = vmatprep.subr.bf16.mxu0 %v247
    %294 = vmatpush1.bf16.msra.mxu0 %v246
    %295 = vmatprep.subr.bf16.mxu0 %v244
    %296 = vmatpush1.bf16.msra.mxu0 %v243
    %297 = vmatprep.subr.bf16.mxu0 %v241
    %298 = vmatpush1.bf16.msra.mxu0 %v240
    %299 = vmatprep.subr.bf16.mxu0 %v238
    %300 = vmatpush1.bf16.msra.mxu0 %v237
    %301 = vmatprep.subr.bf16.mxu0 0
    %302 = vmatpush2.bf16.msra.mxu0 0
    %303 = vmatprep.subr.bf16.mxu0 0
    %304 = vmatpush2.bf16.msra.mxu0 0
    %305 = vmatprep.subr.bf16.mxu0 0
    %306 = vmatpush2.bf16.msra.mxu0 0
    %307 = vmatprep.subr.bf16.mxu0 0
    %308 = vmatpush2.bf16.msra.mxu0 0
    %309 = vmatprep.subr.bf16.mxu0 0
    %310 = vmatpush2.bf16.msra.mxu0 0
    %311 = vmatprep.subr.bf16.mxu0 0
    %312 = vmatpush2.bf16.msra.mxu0 0
    %313 = vmatprep.subr.bf16.mxu0 0
    %314 = vmatpush2.bf16.msra.mxu0 0
    %315 = vmatprep.subr.bf16.mxu0 0
    %316 = vmatpush2.bf16.msra.mxu0 0
    %317 = vmatprep.mubr.bf16.mxu0 0
    %318 = vmatmul.mubr.bf16.gmra.mxu0 %v141
    %v319 = vpop.f32.mrf.mxu0
    %v320 = vadd.f32 %v97, %v319
    %v321 = vpop.f32.mrf.mxu0
    %v322 = vadd.f32 %v101, %v321
    %v323 = vpop.f32.mrf.mxu0
    %v324 = vadd.f32 %v97, %v323
    %v325 = vpop.f32.mrf.mxu0
    %v326 = vadd.f32 %v101, %v325
    %327 = vmatprep.mubr.bf16.mxu0 0
    %328 = vmatmul.mubr.bf16.gmra.mxu0 %v142
    %v329 = vpop.f32.mrf.mxu0
    %v330 = vadd.f32 %v97, %v329
    %v331 = vpop.f32.mrf.mxu0
    %v332 = vadd.f32 %v101, %v331
    %v333 = vpop.f32.mrf.mxu0
    %v334 = vadd.f32 %v97, %v333
    %v335 = vpop.f32.mrf.mxu0
    %v336 = vadd.f32 %v101, %v335
    %337 = vmatprep.mubr.bf16.mxu0 0
    %338 = vmatmul.mubr.bf16.gmra.mxu0 %v143
    %v339 = vpop.f32.mrf.mxu0
    %v340 = vadd.f32 %v97, %v339
    %v341 = vpop.f32.mrf.mxu0
    %v342 = vadd.f32 %v101, %v341
    %v343 = vpop.f32.mrf.mxu0
    %v344 = vadd.f32 %v97, %v343
    %v345 = vpop.f32.mrf.mxu0
    %v346 = vadd.f32 %v101, %v345
    %347 = vmatprep.mubr.bf16.mxu0 0
    %348 = vmatmul.mubr.bf16.gmra.mxu0 %v144
    %v349 = vpop.f32.mrf.mxu0
    %v350 = vadd.f32 %v97, %v349
    %v351 = vpop.f32.mrf.mxu0
    %v352 = vadd.f32 %v101, %v351
    %v353 = vpop.f32.mrf.mxu0
    %v354 = vadd.f32 %v97, %v353
    %v355 = vpop.f32.mrf.mxu0
    %v356 = vadd.f32 %v101, %v355
    %357 = vmatprep.mubr.bf16.mxu0 0
    %358 = vmatmul.mubr.bf16.gmra.mxu0 %v145
    %v359 = vpop.f32.mrf.mxu0
    %v360 = vadd.f32 %v97, %v359
    %v361 = vpop.f32.mrf.mxu0
    %v362 = vadd.f32 %v101, %v361
    %v363 = vpop.f32.mrf.mxu0
    %v364 = vadd.f32 %v97, %v363
    %v365 = vpop.f32.mrf.mxu0
    %v366 = vadd.f32 %v101, %v365
    %367 = vmatprep.mubr.bf16.mxu0 0
    %368 = vmatmul.mubr.bf16.gmra.mxu0 %v146
    %v369 = vpop.f32.mrf.mxu0
    %v370 = vadd.f32 %v97, %v369
    %v371 = vpop.f32.mrf.mxu0
    %v372 = vadd.f32 %v101, %v371
    %v373 = vpop.f32.mrf.mxu0
    %v374 = vadd.f32 %v97, %v373
    %v375 = vpop.f32.mrf.mxu0
    %v376 = vadd.f32 %v101, %v375
    %377 = vmatprep.mubr.bf16.mxu0 0
    %378 = vmatmul.mubr.bf16.gmra.mxu0 %v147
    %v379 = vpop.f32.mrf.mxu0
    %v380 = vadd.f32 %v97, %v379
    %v381 = vpop.f32.mrf.mxu0
    %v382 = vadd.f32 %v101, %v381
    %v383 = vpop.f32.mrf.mxu0
    %v384 = vadd.f32 %v97, %v383
    %v385 = vpop.f32.mrf.mxu0
    %v386 = vadd.f32 %v101, %v385
    %387 = vmatprep.mubr.bf16.mxu0 0
    %388 = vmatmul.mubr.bf16.gmra.mxu0 %v148
    %v389 = vpop.f32.mrf.mxu0
    %v390 = vadd.f32 %v97, %v389
    %v391 = vpop.f32.mrf.mxu0
    %v392 = vadd.f32 %v101, %v391
    %v393 = vpop.f32.mrf.mxu0
    %v394 = vadd.f32 %v97, %v393
    %v395 = vpop.f32.mrf.mxu0
    %v396 = vadd.f32 %v101, %v395
    %397 = vdwg.mxu0
    %398 = vmatprep.subr.bf16.mxu0 0
    %399 = vmatpush1.bf16.msra.mxu0 %v260
    %400 = vmatprep.subr.bf16.mxu0 0
    %401 = vmatpush1.bf16.msra.mxu0 %v257
    %402 = vmatprep.subr.bf16.mxu0 0
    %403 = vmatpush1.bf16.msra.mxu0 %v254
    %404 = vmatprep.subr.bf16.mxu0 0
    %405 = vmatpush1.bf16.msra.mxu0 %v251
    %406 = vmatprep.subr.bf16.mxu0 0
    %407 = vmatpush1.bf16.msra.mxu0 %v248
    %408 = vmatprep.subr.bf16.mxu0 0
    %409 = vmatpush1.bf16.msra.mxu0 %v245
    %410 = vmatprep.subr.bf16.mxu0 0
    %411 = vmatpush1.bf16.msra.mxu0 %v242
    %412 = vmatprep.subr.bf16.mxu0 0
    %413 = vmatpush1.bf16.msra.mxu0 %v239
    %414 = vmatprep.subr.bf16.mxu0 0
    %415 = vmatpush2.bf16.msra.mxu0 0
    %416 = vmatprep.subr.bf16.mxu0 0
    %417 = vmatpush2.bf16.msra.mxu0 0
    %418 = vmatprep.subr.bf16.mxu0 0
    %419 = vmatpush2.bf16.msra.mxu0 0
    %420 = vmatprep.subr.bf16.mxu0 0
    %421 = vmatpush2.bf16.msra.mxu0 0
    %422 = vmatprep.subr.bf16.mxu0 0
    %423 = vmatpush2.bf16.msra.mxu0 0
    %424 = vmatprep.subr.bf16.mxu0 0
    %425 = vmatpush2.bf16.msra.mxu0 0
    %426 = vmatprep.subr.bf16.mxu0 0
    %427 = vmatpush2.bf16.msra.mxu0 0
    %428 = vmatprep.subr.bf16.mxu0 0
    %429 = vmatpush2.bf16.msra.mxu0 0
    %430 = vmatprep.mubr.bf16.mxu0 0
    %431 = vmatmul.mubr.bf16.gmra.mxu0 %v141
    %v432 = vpop.f32.mrf.mxu0
    %v433 = vadd.f32 %v105, %v432
    %v434 = vpop.f32.mrf.mxu0
    %v435 = vpop.f32.mrf.mxu0
    %v436 = vadd.f32 %v105, %v435
    %v437 = vpop.f32.mrf.mxu0
    %438 = vmatprep.mubr.bf16.mxu0 0
    %439 = vmatmul.mubr.bf16.gmra.mxu0 %v142
    %v440 = vpop.f32.mrf.mxu0
    %v441 = vadd.f32 %v105, %v440
    %v442 = vpop.f32.mrf.mxu0
    %v443 = vpop.f32.mrf.mxu0
    %v444 = vadd.f32 %v105, %v443
    %v445 = vpop.f32.mrf.mxu0
    %446 = vmatprep.mubr.bf16.mxu0 0
    %447 = vmatmul.mubr.bf16.gmra.mxu0 %v143
    %v448 = vpop.f32.mrf.mxu0
    %v449 = vadd.f32 %v105, %v448
    %v450 = vpop.f32.mrf.mxu0
    %v451 = vpop.f32.mrf.mxu0
    %v452 = vadd.f32 %v105, %v451
    %v453 = vpop.f32.mrf.mxu0
    %454 = vmatprep.mubr.bf16.mxu0 0
    %455 = vmatmul.mubr.bf16.gmra.mxu0 %v144
    %v456 = vpop.f32.mrf.mxu0
    %v457 = vadd.f32 %v105, %v456
    %v458 = vpop.f32.mrf.mxu0
    %v459 = vpop.f32.mrf.mxu0
    %v460 = vadd.f32 %v105, %v459
    %v461 = vpop.f32.mrf.mxu0
    %462 = vmatprep.mubr.bf16.mxu0 0
    %463 = vmatmul.mubr.bf16.gmra.mxu0 %v145
    %v464 = vpop.f32.mrf.mxu0
    %v465 = vadd.f32 %v105, %v464
    %v466 = vpop.f32.mrf.mxu0
    %v467 = vpop.f32.mrf.mxu0
    %v468 = vadd.f32 %v105, %v467
    %v469 = vpop.f32.mrf.mxu0
    %470 = vmatprep.mubr.bf16.mxu0 0
    %471 = vmatmul.mubr.bf16.gmra.mxu0 %v146
    %v472 = vpop.f32.mrf.mxu0
    %v473 = vadd.f32 %v105, %v472
    %v474 = vpop.f32.mrf.mxu0
    %v475 = vpop.f32.mrf.mxu0
    %v476 = vadd.f32 %v105, %v475
    %v477 = vpop.f32.mrf.mxu0
    %478 = vmatprep.mubr.bf16.mxu0 0
    %479 = vmatmul.mubr.bf16.gmra.mxu0 %v147
    %v480 = vpop.f32.mrf.mxu0
    %v481 = vadd.f32 %v105, %v480
    %v482 = vpop.f32.mrf.mxu0
    %v483 = vpop.f32.mrf.mxu0
    %v484 = vadd.f32 %v105, %v483
    %v485 = vpop.f32.mrf.mxu0
    %486 = vmatprep.mubr.bf16.mxu0 0
    %487 = vmatmul.mubr.bf16.gmra.mxu0 %v148
    %v488 = vpop.f32.mrf.mxu0
    %v489 = vadd.f32 %v105, %v488
    %v490 = vpop.f32.mrf.mxu0
    %v491 = vpop.f32.mrf.mxu0
    %v492 = vadd.f32 %v105, %v491
    %v493 = vpop.f32.mrf.mxu0
    %494 = vdwg.mxu0
    %495 = vst [vmem:[#allocation7] sm:$0xff] %v320
    %496 = vst [vmem:[#allocation7 + $0x8] sm:$0xff] %v322
    %497 = vst [vmem:[#allocation7 + $0x10] sm:$0xff] %v433
    %498 = vst [vmem:[#allocation7 + $0x18] sm:$0xff] %v324
    %499 = vst [vmem:[#allocation7 + $0x20] sm:$0xff] %v326
    %500 = vst [vmem:[#allocation7 + $0x28] sm:$0xff] %v436
    %501 = vst [vmem:[#allocation7 + $0x30] sm:$0xff] %v330
    %502 = vst [vmem:[#allocation7 + $0x38] sm:$0xff] %v332
    %503 = vst [vmem:[#allocation7 + $0x40] sm:$0xff] %v441
    %504 = vst [vmem:[#allocation7 + $0x48] sm:$0xff] %v334
    %505 = vst [vmem:[#allocation7 + $0x50] sm:$0xff] %v336
    %506 = vst [vmem:[#allocation7 + $0x58] sm:$0xff] %v444
    %507 = vst [vmem:[#allocation7 + $0x60] sm:$0xff] %v340
    %508 = vst [vmem:[#allocation7 + $0x68] sm:$0xff] %v342
    %509 = vst [vmem:[#allocation7 + $0x70] sm:$0xff] %v449
    %510 = vst [vmem:[#allocation7 + $0x78] sm:$0xff] %v344
    %511 = vst [vmem:[#allocation7 + $0x80] sm:$0xff] %v346
    %512 = vst [vmem:[#allocation7 + $0x88] sm:$0xff] %v452
    %513 = vst [vmem:[#allocation7 + $0x90] sm:$0xff] %v350
    %514 = vst [vmem:[#allocation7 + $0x98] sm:$0xff] %v352
    %515 = vst [vmem:[#allocation7 + $0xa0] sm:$0xff] %v457
    %516 = vst [vmem:[#allocation7 + $0xa8] sm:$0xff] %v354
    %517 = vst [vmem:[#allocation7 + $0xb0] sm:$0xff] %v356
    %518 = vst [vmem:[#allocation7 + $0xb8] sm:$0xff] %v460
    %519 = vst [vmem:[#allocation7 + $0xc0] sm:$0xff] %v360
    %520 = vst [vmem:[#allocation7 + $0xc8] sm:$0xff] %v362
    %521 = vst [vmem:[#allocation7 + $0xd0] sm:$0xff] %v465
    %522 = vst [vmem:[#allocation7 + $0xd8] sm:$0xff] %v364
    %523 = vst [vmem:[#allocation7 + $0xe0] sm:$0xff] %v366
    %524 = vst [vmem:[#allocation7 + $0xe8] sm:$0xff] %v468
    %525 = vst [vmem:[#allocation7 + $0xf0] sm:$0xff] %v370
    %526 = vst [vmem:[#allocation7 + $0xf8] sm:$0xff] %v372
    %527 = vst [vmem:[#allocation7 + $0x100] sm:$0xff] %v473
    %528 = vst [vmem:[#allocation7 + $0x108] sm:$0xff] %v374
    %529 = vst [vmem:[#allocation7 + $0x110] sm:$0xff] %v376
    %530 = vst [vmem:[#allocation7 + $0x118] sm:$0xff] %v476
    %531 = vst [vmem:[#allocation7 + $0x120] sm:$0xff] %v380
    %532 = vst [vmem:[#allocation7 + $0x128] sm:$0xff] %v382
    %533 = vst [vmem:[#allocation7 + $0x130] sm:$0xff] %v481
    %534 = vst [vmem:[#allocation7 + $0x138] sm:$0xff] %v384
    %535 = vst [vmem:[#allocation7 + $0x140] sm:$0xff] %v386
    %536 = vst [vmem:[#allocation7 + $0x148] sm:$0xff] %v484
    %537 = vst [vmem:[#allocation7 + $0x150] sm:$0xff] %v390
    %538 = vst [vmem:[#allocation7 + $0x158] sm:$0xff] %v392
    %539 = vst [vmem:[#allocation7 + $0x160] sm:$0xff] %v489
    %540 = vst [vmem:[#allocation7 + $0x168] sm:$0xff] %v394
    %541 = vst [vmem:[#allocation7 + $0x170] sm:$0xff] %v396
    %542 = vst [vmem:[#allocation7 + $0x178] sm:$0xff] %v492
    // Predicated region
    $region22: #{tpu_custom_call.1} parent=1 // pred_check
      _
    $region23: #{tpu_custom_call.1} parent=1 // pred_check_branch
      %544 = sbr.rel (0) target = $region25
    $region24: #{tpu_custom_call.1} parent=1 // pred_region
      %s546 = ssub.s32 6144, 6144
      %547 = vsyncadd [#allocation4], %s546
      %s548 = sshll.u32 [#allocation7], 4
      %s549 = int_to_ptr.vmem [resolvable:$true] %s548
      %554 = dma.vmem_to_hbm [thread:$0]  %s549, 6144, %s3, [#allocation4], 384, 384, 24
    $region25: #{tpu_custom_call.1} parent=1 // pred_fallthru
      _
    // Predicated region
    $region26: #{tpu_custom_call.1} parent=1 // pred_check
      _
    $region27: #{tpu_custom_call.1} parent=1 // pred_check_branch
      %556 = sbr.rel (0) target = $region29
    $region28: #{tpu_custom_call.1} parent=1 // pred_region
      %557 = dma.done [#allocation4], 6144
    $region29: #{tpu_custom_call.1} parent=1 // pred_fallthru
      _
    %558 = vsyncpa [#allocation3], 1
    %559 = vsyncpa [#allocation6], 1
    %560 = vsyncpa [#allocation4], 1

</llo_original>
